<compile_context>
chip_gen: v6e
topology: v6e:2x2x1
jax: 0.10.0
libtpu: 0.0.40
codegen_flags: <defaults>
</compile_context>

<pallas_src>
import functools
import math

import jax
import jax.numpy as jnp
from jax.experimental import pallas as pl
from jax.experimental.pallas import tpu as pltpu


_SQRT_HALF = 1.0 / math.sqrt(2.0)
_SQRT_2_OVER_PI = math.sqrt(2.0 / math.pi)


def _gelu_erf(x):
    # nn.GELU() default: exact erf-based GELU (keeps the module's semantics).
    return 0.5 * x * (1.0 + jax.lax.erf(x * _SQRT_HALF))


def _gelu_tanh(x):
    # Optional tanh approximation (EUP slot instead of a long VPU erf polynomial).
    # Different numerics than nn.GELU() default -- opt-in only.
    return 0.5 * x * (1.0 + jnp.tanh(_SQRT_2_OVER_PI * (x + 0.044715 * x * x * x)))


def _mlp_kernel(x_ref, w1_ref, b1_ref, w2_ref, b2_ref, o_ref, acc_ref, *, gelu_fn):
    k = pl.program_id(1)

    @pl.when(k == 0)
    def _init():
        # Fold the c_proj bias into the accumulator init (saves a [tm, D] epilogue add).
        acc_ref[...] = jnp.broadcast_to(
            b2_ref[...].astype(jnp.float32), acc_ref.shape)

    # First matmul on the MXU, f32 accumulation; GELU + bias in f32 on VPU/EUP.
    h = jnp.dot(x_ref[...], w1_ref[...], preferred_element_type=jnp.float32)
    h = gelu_fn(h + b1_ref[...].astype(jnp.float32))                 # [tm, th] f32
    # Second matmul: accumulate this H-tile's partial product into the f32 scratch.
    acc_ref[...] += jnp.dot(h.astype(w2_ref.dtype), w2_ref[...],
                            preferred_element_type=jnp.float32)

    @pl.when(k == pl.num_programs(1) - 1)
    def _store():
        o_ref[...] = acc_ref[...].astype(o_ref.dtype)


def _round_up(x, m):
    return (x + m - 1) // m * m


def _hw_info():
    """Return (physical VMEM bytes, lowercase device kind); robust to query failure."""
    kind = ""
    try:
        kind = jax.devices()[0].device_kind.lower()
    except Exception:
        pass
    vmem = None
    try:
        vmem = int(pltpu.get_tpu_info().vmem_capacity_bytes)
    except Exception:
        vmem = None
    if not vmem or vmem <= 0:
        # v7x: 64 MiB per TensorCore; v5e/v6e: 128 MiB.
        vmem = (64 << 20) if "v7" in kind else (128 << 20)
    return vmem, kind


def _largest_h_tile(H, th_max):
    """Largest lane-aligned tile that divides H and is <= th_max (None if impossible)."""
    if H <= th_max:
        return H
    if H % 128 != 0:
        return None
    c = (th_max // 128) * 128
    while c >= 128:
        if H % c == 0:
            return c
        c -= 128
    return None


def _choose_tiles(M, D, H, in_item, out_item, budget, tm_target, row_align):
    """Pick (tm, th) so double-buffered tiles + f32 scratch fit the VMEM budget."""
    tm_cap = max(row_align, _round_up(min(M, tm_target), row_align))
    tms, t = [], tm_cap
    while True:
        tms.append(t)
        if t <= row_align:
            break
        nxt = max(row_align, _round_up(t // 2, row_align))
        if nxt == t:
            break
        t = nxt
    slack = 1 << 20
    for tm in tms:
        fixed = (2 * tm * D * in_item      # x tile (double buffered)
                 + 2 * tm * D * out_item   # output tile
                 + tm * D * 4              # f32 accumulator scratch
                 + slack)
        per_th = 4 * D * in_item + 2 * tm * 4   # W1+W2 double-buffers + f32 hidden
        th_max = max(0, budget - fixed) // per_th
        th = _largest_h_tile(H, th_max)
        if th is not None:
            return tm, th
    # Fallback for extreme shapes: smallest row tile, minimal lane-aligned H tile.
    return tms[-1], (128 if H % 128 == 0 else H)


def mlp_forward(x, w1, b1, w2, b2, *, tm=None, th=None,
                compute_dtype=jnp.bfloat16, approx_gelu=False):
    """y = gelu(x @ W1 + b1) @ W2 + b2 (Dropout(p=0) is identity).

    x: [B, T, D]; w1: [D, H]; b1: [H]; w2: [H, D]; b2: [D]  (H = 4*D).
    w1/w2 are the transposes of the PyTorch nn.Linear weights.

    Notes:
      * compute_dtype=bfloat16 rounds x/W1/W2 and the GELU output to bf16 before the
        MXU (accumulation stays f32) -- a small, intentional deviation from the f32
        PyTorch module. Use compute_dtype=jnp.float32 for near-exact semantics.
      * For best performance pass w1/w2 already stored in compute_dtype so no
        per-call cast (HBM round-trip) is needed.
    """
    B, T, D = x.shape
    H = w1.shape[1]
    M = B * T
    out_dtype = x.dtype

    in_item = jnp.dtype(compute_dtype).itemsize
    out_item = jnp.dtype(out_dtype).itemsize
    row_align = {4: 8, 2: 16, 1: 32}.get(in_item, 8)

    # ---- generation-aware tile sizing & VMEM budget -------------------------
    vmem_cap, kind = _hw_info()
    budget = int(0.75 * vmem_cap)          # ~96 MiB on v5e/v6e, ~48 MiB on v7x
    # Weight-stream intensity is exactly tm flops/byte: v5e is MXU-bound at 256,
    # v6e/v7x need ~512+ to leave the HBM roofline.
    tm_target = 256 if "v5" in kind else 512

    auto_tm, auto_th = _choose_tiles(M, D, H, in_item, out_item, budget,
                                     tm_target, row_align)
    if tm is None:
        tm = auto_tm
        # v7x has two TensorCores: if there is only one row tile, split it so both
        # cores get work -- but never drop below the 256-wide MXU.
        if "v7" in kind and pl.cdiv(M, tm) < 2 and tm > 256 and M > 256:
            tm = max(256, _round_up(tm // 2, row_align))
    if th is None:
        th = auto_th
    assert tm % row_align == 0, "tm must be aligned to the sublane packing"
    assert H % th == 0, "th must divide the hidden dimension"

    # Ragged last row block is handled by Pallas (OOB stores are discarded); no pad.
    grid = (pl.cdiv(M, tm), H // th)

    # ---- operand layout / dtypes (casts skipped when already matching) ------
    x2d = x.reshape(M, D)
    x2d = x2d if x2d.dtype == compute_dtype else x2d.astype(compute_dtype)
    w1c = w1 if w1.dtype == compute_dtype else w1.astype(compute_dtype)
    w2c = w2 if w2.dtype == compute_dtype else w2.astype(compute_dtype)
    b1_2d = b1.reshape(1, H).astype(jnp.float32)
    b2_2d = b2.reshape(1, D).astype(jnp.float32)

    # ---- explicit VMEM hint (headroom, per-chip cap) -------------------------
    vmem_est = (2 * tm * D * in_item       # x tile (double buffered)
                + 2 * D * th * in_item     # W1 tile
                + 2 * th * D * in_item     # W2 tile
                + 2 * tm * D * out_item    # output tile
                + tm * D * 4               # f32 accumulator scratch
                + 2 * tm * th * 4          # f32 hidden intermediate headroom
                + 4 * (th + D) * 4)        # biases
    vmem_limit = int(min(budget, max(32 << 20, int(1.25 * vmem_est))))

    n_row_tiles, n_h_tiles = grid
    weight_bytes = 2 * D * H * in_item * (n_row_tiles if n_h_tiles > 1 else 1)
    cost = pl.CostEstimate(
        flops=4 * M * D * H,
        transcendentals=M * H,
        bytes_accessed=int(M * D * (in_item + out_item) + weight_bytes + 4 * (H + D)),
    )

    kernel = functools.partial(
        _mlp_kernel, gelu_fn=_gelu_tanh if approx_gelu else _gelu_erf)

    out2d = pl.pallas_call(
        kernel,
        out_shape=jax.ShapeDtypeStruct((M, D), out_dtype),
        grid_spec=pltpu.PrefetchScalarGridSpec(
            num_scalar_prefetch=0,
            grid=grid,
            in_specs=[
                pl.BlockSpec((tm, D), lambda i, k: (i, 0)),   # x row tile (streams)
                pl.BlockSpec((D, th), lambda i, k: (0, k)),   # W1 (resident when th==H)
                pl.BlockSpec((1, th), lambda i, k: (0, k)),   # b1 tile
                pl.BlockSpec((th, D), lambda i, k: (k, 0)),   # W2 (resident when th==H)
                pl.BlockSpec((1, D), lambda i, k: (0, 0)),    # b2 (tiny, resident)
            ],
            out_specs=pl.BlockSpec((tm, D), lambda i, k: (i, 0)),
            scratch_shapes=[pltpu.VMEM((tm, D), jnp.float32)],
        ),
        compiler_params=pltpu.CompilerParams(
            dimension_semantics=("parallel", "arbitrary"),
            vmem_limit_bytes=vmem_limit,
        ),
        cost_estimate=cost,
    )(x2d, w1c, b1_2d, w2c, b2_2d)

    return out2d.reshape(B, T, D)


def reference_mlp(x, w1, b1, w2, b2):
    xf = x.astype(jnp.float32)
    h = jnp.einsum("btd,dh->bth", xf, w1.astype(jnp.float32)) + b1
    h = _gelu_erf(h)
    y = jnp.einsum("bth,hd->btd", h, w2.astype(jnp.float32)) + b2
    return y.astype(x.dtype)


def _make_params(key, D, H):
    k1, k2, k3, k4 = jax.random.split(key, 4)
    bound1 = 1.0 / math.sqrt(D)
    bound2 = 1.0 / math.sqrt(H)
    w1 = jax.random.uniform(k1, (D, H), jnp.float32, -bound1, bound1)   # c_fc.weight^T
    b1 = jax.random.uniform(k2, (H,), jnp.float32, -bound1, bound1)     # c_fc.bias
    w2 = jax.random.uniform(k3, (H, D), jnp.float32, -bound2, bound2)   # c_proj.weight^T
    b2 = jax.random.uniform(k4, (D,), jnp.float32, -bound2, bound2)     # c_proj.bias
    return w1, b1, w2, b2


if __name__ == "__main__":
    key = jax.random.PRNGKey(0)
    kx1, kp1, kx2, kp2 = jax.random.split(key, 4)

    # Case 1: small config consistent with the module (n_embd=32 -> hidden=128).
    # Auto tiling makes the weights fully resident (th == H, single reduction step).
    B, T, D = 2, 8, 32
    H = 4 * D
    x = jax.random.normal(kx1, (B, T, D), dtype=jnp.float32)
    w1, b1, w2, b2 = _make_params(kp1, D, H)
    ref = reference_mlp(x, w1, b1, w2, b2)

    out_f32 = jax.block_until_ready(
        mlp_forward(x, w1, b1, w2, b2, compute_dtype=jnp.float32))
    assert out_f32.shape == (B, T, D)
    err = float(jnp.max(jnp.abs(out_f32 - ref)))
    assert jnp.allclose(out_f32, ref, atol=1e-5, rtol=1e-5), (
        "f32 path max abs err = %e" % err)

    # Default bf16-MXU path: looser tolerance because matmul inputs are rounded to
    # bfloat16 (accumulation stays f32).
    out_bf16 = jax.block_until_ready(mlp_forward(x, w1, b1, w2, b2))
    assert out_bf16.shape == (B, T, D)
    err = float(jnp.max(jnp.abs(out_bf16 - ref)))
    assert jnp.allclose(out_bf16, ref, atol=5e-2, rtol=5e-2), (
        "bf16 path max abs err = %e" % err)

    # Case 2: exercise the streamed-weight path (multiple row tiles AND multiple
    # H reduction steps) with explicit small tiles.
    B2, T2, D2 = 2, 24, 64
    H2 = 4 * D2
    x2 = jax.random.normal(kx2, (B2, T2, D2), dtype=jnp.float32)
    p2 = _make_params(kp2, D2, H2)
    ref2 = reference_mlp(x2, *p2)
    out2 = jax.block_until_ready(
        mlp_forward(x2, *p2, tm=16, th=128, compute_dtype=jnp.float32))
    err = float(jnp.max(jnp.abs(out2 - ref2)))
    assert jnp.allclose(out2, ref2, atol=1e-4, rtol=1e-4), (
        "streamed path max abs err = %e" % err)

    print("KERNEL_OK")
</pallas_src>

<mosaic_0001>
module attributes {stable_mosaic.version = 11 : i64} {
  func.func @_mlp_kernel(%arg0: i32, %arg1: i32, %arg2: memref<16x32xf32, #tpu.memory_space<vmem>>, %arg3: memref<32x128xf32, #tpu.memory_space<vmem>>, %arg4: memref<1x128xf32, #tpu.memory_space<vmem>>, %arg5: memref<128x32xf32, #tpu.memory_space<vmem>>, %arg6: memref<1x32xf32, #tpu.memory_space<vmem>>, %arg7: memref<16x32xf32, #tpu.memory_space<vmem>>, %arg8: memref<16x32xf32, #tpu.memory_space<vmem>>) attributes {dimension_semantics = [#tpu.dimension_semantics<parallel>, #tpu.dimension_semantics<arbitrary>], iteration_bounds = array<i64: 1, 1>, scalar_prefetch = 0 : i64, scratch_operands = 1 : i64, tpu.core_type = #tpu.core_type<tc>, window_params = [{transform_indices = @transform_0, window_bounds = array<i64: 16, 32>}, {transform_indices = @transform_1, window_bounds = array<i64: 32, 128>}, {transform_indices = @transform_2, window_bounds = array<i64: 1, 128>}, {transform_indices = @transform_3, window_bounds = array<i64: 128, 32>}, {pipeline_mode = #tpu.pipeline_mode<synchronous>, transform_indices = @transform_4, window_bounds = array<i64: 1, 32>}, {transform_indices = @transform_5, window_bounds = array<i64: 16, 32>}]} {
    %c0_i32 = arith.constant 0 : i32
    %0 = arith.cmpi eq, %arg1, %c0_i32 : i32
    %1 = arith.extui %0 : i1 to i32
    %c0_i32_0 = arith.constant 0 : i32
    %2 = arith.cmpi ne, %1, %c0_i32_0 : i32
    scf.if %2 {
      %c0_18 = arith.constant 0 : index
      %c0_19 = arith.constant 0 : index
      %25 = vector.load %arg6[%c0_18, %c0_19] : memref<1x32xf32, #tpu.memory_space<vmem>>, vector<1x32xf32>
      %26 = vector.shape_cast %25 : vector<1x32xf32> to vector<1x32xf32>
      %27 = vector.broadcast %26 : vector<1x32xf32> to vector<16x32xf32>
      %c0_20 = arith.constant 0 : index
      %c0_21 = arith.constant 0 : index
      %28 = vector.load %arg8[%c0_20, %c0_21] : memref<16x32xf32, #tpu.memory_space<vmem>>, vector<16x32xf32>
      tpu.vector_store %arg8[%c0_20, %c0_21], %27 {strides = array<i32>} : memref<16x32xf32, #tpu.memory_space<vmem>>, vector<16x32xf32>,
    } else {
    }
    %c0 = arith.constant 0 : index
    %c0_1 = arith.constant 0 : index
    %3 = vector.load %arg2[%c0, %c0_1] : memref<16x32xf32, #tpu.memory_space<vmem>>, vector<16x32xf32>
    %c0_2 = arith.constant 0 : index
    %c0_3 = arith.constant 0 : index
    %4 = vector.load %arg3[%c0_2, %c0_3] : memref<32x128xf32, #tpu.memory_space<vmem>>, vector<32x128xf32>
    %cst = arith.constant dense<0.000000e+00> : vector<16x128xf32>
    %5 = tpu.matmul %3, %4, %cst {dimension_numbers = #tpu.dot_dimension_numbers<[1], [0], [0], [1], [0, 0, 1, 1], [], []>} : vector<16x32xf32>, vector<32x128xf32>, vector<16x128xf32> -> vector<16x128xf32>
    %c0_4 = arith.constant 0 : index
    %c0_5 = arith.constant 0 : index
    %6 = vector.load %arg4[%c0_4, %c0_5] : memref<1x128xf32, #tpu.memory_space<vmem>>, vector<1x128xf32>
    %7 = vector.broadcast %6 : vector<1x128xf32> to vector<16x128xf32>
    %8 = arith.addf %5, %7 : vector<16x128xf32>
    %cst_6 = arith.constant 5.000000e-01 : f32
    %9 = vector.broadcast %cst_6 : f32 to vector<16x128xf32>
    %10 = arith.mulf %9, %8 : vector<16x128xf32>
    %cst_7 = arith.constant 0.707106769 : f32
    %11 = vector.broadcast %cst_7 : f32 to vector<16x128xf32>
    %12 = arith.mulf %8, %11 : vector<16x128xf32>
    %13 = math.erf %12 : vector<16x128xf32>
    %cst_8 = arith.constant 1.000000e+00 : f32
    %14 = vector.broadcast %cst_8 : f32 to vector<16x128xf32>
    %15 = arith.addf %14, %13 : vector<16x128xf32>
    %16 = arith.mulf %10, %15 : vector<16x128xf32>
    %c0_9 = arith.constant 0 : index
    %c0_10 = arith.constant 0 : index
    %17 = vector.load %arg8[%c0_9, %c0_10] : memref<16x32xf32, #tpu.memory_space<vmem>>, vector<16x32xf32>
    %c0_11 = arith.constant 0 : index
    %c0_12 = arith.constant 0 : index
    %18 = vector.load %arg5[%c0_11, %c0_12] : memref<128x32xf32, #tpu.memory_space<vmem>>, vector<128x32xf32>
    %cst_13 = arith.constant dense<0.000000e+00> : vector<16x32xf32>
    %19 = tpu.matmul %16, %18, %cst_13 {dimension_numbers = #tpu.dot_dimension_numbers<[1], [0], [0], [1], [0, 0, 1, 1], [], []>} : vector<16x128xf32>, vector<128x32xf32>, vector<16x32xf32> -> vector<16x32xf32>
    %20 = arith.addf %17, %19 : vector<16x32xf32>
    %c0_14 = arith.constant 0 : index
    %c0_15 = arith.constant 0 : index
    %21 = vector.load %arg8[%c0_14, %c0_15] : memref<16x32xf32, #tpu.memory_space<vmem>>, vector<16x32xf32>
    tpu.vector_store %arg8[%c0_14, %c0_15], %20 {strides = array<i32>} : memref<16x32xf32, #tpu.memory_space<vmem>>, vector<16x32xf32>,
    %c0_i32_16 = arith.constant 0 : i32
    %22 = arith.cmpi eq, %arg1, %c0_i32_16 : i32
    %23 = arith.extui %22 : i1 to i32
    %c0_i32_17 = arith.constant 0 : i32
    %24 = arith.cmpi ne, %23, %c0_i32_17 : i32
    scf.if %24 {
      %c0_18 = arith.constant 0 : index
      %c0_19 = arith.constant 0 : index
      %25 = vector.load %arg8[%c0_18, %c0_19] : memref<16x32xf32, #tpu.memory_space<vmem>>, vector<16x32xf32>
      %c0_20 = arith.constant 0 : index
      %c0_21 = arith.constant 0 : index
      %26 = vector.load %arg7[%c0_20, %c0_21] : memref<16x32xf32, #tpu.memory_space<vmem>>, vector<16x32xf32>
      tpu.vector_store %arg7[%c0_20, %c0_21], %25 {strides = array<i32>} : memref<16x32xf32, #tpu.memory_space<vmem>>, vector<16x32xf32>,
    } else {
    }
    return
  }
  func.func @transform_0(%arg0: i32, %arg1: i32) -> (i32, i32) {
    %c0_i32 = arith.constant 0 : i32
    %c0_i32_0 = arith.constant 0 : i32
    return %arg0, %c0_i32 : i32, i32
  }
  func.func @transform_1(%arg0: i32, %arg1: i32) -> (i32, i32) {
    %c0_i32 = arith.constant 0 : i32
    %c0_i32_0 = arith.constant 0 : i32
    return %c0_i32, %arg1 : i32, i32
  }
  func.func @transform_2(%arg0: i32, %arg1: i32) -> (i32, i32) {
    %c0_i32 = arith.constant 0 : i32
    %c0_i32_0 = arith.constant 0 : i32
    return %c0_i32, %arg1 : i32, i32
  }
  func.func @transform_3(%arg0: i32, %arg1: i32) -> (i32, i32) {
    %c0_i32 = arith.constant 0 : i32
    %c0_i32_0 = arith.constant 0 : i32
    return %arg1, %c0_i32 : i32, i32
  }
  func.func @transform_4(%arg0: i32, %arg1: i32) -> (i32, i32) {
    %c0_i32 = arith.constant 0 : i32
    %c0_i32_0 = arith.constant 0 : i32
    %c0_i32_1 = arith.constant 0 : i32
    return %c0_i32, %c0_i32_0 : i32, i32
  }
  func.func @transform_5(%arg0: i32, %arg1: i32) -> (i32, i32) {
    %c0_i32 = arith.constant 0 : i32
    %c0_i32_0 = arith.constant 0 : i32
    return %arg0, %c0_i32 : i32, i32
  }
}

</mosaic_0001>

<llo_original>
// kernel: tpu_custom_call.1
$region0: #{tpu_custom_call.1}
  #allocation0 [shape = 'u32[]', space=smem, size = 0x4, offset = 0x4, fixed_abs, tag = 'smem constant byte address 0x4 - core index']
  #allocation1 [shape = 'u32[144,128]{1,0:T(1,128)}', space=vmem, size = 0x12000, scoped, tag = 'internal scratch']
  #allocation2 [shape = 'f32[16,32]{1,0:T(8,128)}', space=vmem, size = 0x2000, scoped, tag = 'scratch operand']
  %s0 = inlined_call_operand.vmem [shape: f32[16,32], index: 0, kind: input, shape index: {}]
  %s1 = inlined_call_operand.vmem [shape: f32[32,128], index: 1, kind: input, shape index: {}]
  %s2 = inlined_call_operand.vmem [shape: f32[1,128], index: 2, kind: input, shape index: {}]
  %s3 = inlined_call_operand.vmem [shape: f32[128,32], index: 3, kind: input, shape index: {}]
  %s4 = inlined_call_operand.vmem [shape: f32[1,32], index: 4, kind: input, shape index: {}]
  %s5 = inlined_call_operand.hbm [shape: f32[16,32], index: 5, kind: output, shape index: {}]
  %s6 = sld [smem:[#allocation0]]
  $region38: #{tpu_custom_call.1} parent=0
    _
  %s8 = ssub.s32 1, %s6
  %s9 = scalar_select 0, %s8, %s6
  $region1: #{tpu_custom_call.1} parent=0
    #allocation3 [shape = 'u8[8192]{0}', space=vmem, size = 0x2000, scoped, tag = 'output window, operand 0, single buffered']
    #allocation4 [shape = 's32[1]{0}', space=sflag, size = 0x4, scoped, tag = 'scoped memory for tpu_custom_call.1']
    %10 = vsyncpa [#allocation4], 0
    // Predicated region
    $region2: #{tpu_custom_call.1} parent=1 // pred_check
      _
    $region3: #{tpu_custom_call.1} parent=1 // pred_check_branch
      %12 = sbr.rel (0) target = $region5
    $region4: #{tpu_custom_call.1} parent=1 // pred_region
      _
    $region5: #{tpu_custom_call.1} parent=1 // pred_fallthru
      _
    // Predicated region
    $region6: #{tpu_custom_call.1} parent=1 // pred_check
      _
    $region7: #{tpu_custom_call.1} parent=1 // pred_check_branch
      %14 = sbr.rel (0) target = $region9
    $region8: #{tpu_custom_call.1} parent=1 // pred_region
      _
    $region9: #{tpu_custom_call.1} parent=1 // pred_fallthru
      _
    // Predicated region
    $region10: #{tpu_custom_call.1} parent=1 // pred_check
      _
    $region11: #{tpu_custom_call.1} parent=1 // pred_check_branch
      %16 = sbr.rel (0) target = $region13
    $region12: #{tpu_custom_call.1} parent=1 // pred_region
      _
    $region13: #{tpu_custom_call.1} parent=1 // pred_fallthru
      _
    // Predicated region
    $region14: #{tpu_custom_call.1} parent=1 // pred_check
      _
    $region15: #{tpu_custom_call.1} parent=1 // pred_check_branch
      %18 = sbr.rel (0) target = $region17
    $region16: #{tpu_custom_call.1} parent=1 // pred_region
      _
    $region17: #{tpu_custom_call.1} parent=1 // pred_fallthru
      _
    // Predicated region
    $region18: #{tpu_custom_call.1} parent=1 // pred_check
      _
    $region19: #{tpu_custom_call.1} parent=1 // pred_check_branch
      %20 = sbr.rel (0) target = $region21
    $region20: #{tpu_custom_call.1} parent=1 // pred_region
      _
    $region21: #{tpu_custom_call.1} parent=1 // pred_fallthru
      _
    %p21 = scmp.eq.s32.totalorder 0, 0
    // Predicated region
    $region22: #{tpu_custom_call.1} parent=1 // pred_check
      %p22 = pneg %p21
    $region23: #{tpu_custom_call.1} parent=1 // pred_check_branch
      %24 = sbr.rel (%p22) target = $region25
    $region24: #{tpu_custom_call.1} parent=1 // pred_region
      %v25 = vld [vmem:[%s4] sm:$0x1]
      %v27 = vlaneseq
      %v28 = vshrl.u32 %v27, 7
      %v29 = vsub.s32 0, %v28
      %v30 = vrot.slane %v25, %v29
      %vm32 = vcmask 261120
      %33 = vst.msk [vmem:[#allocation2] sm:$0xff] %vm32, %v30
      %34 = vst.msk [vmem:[#allocation2 + $0x8] sm:$0xff] %vm32, %v30
    $region25: #{tpu_custom_call.1} parent=1 // pred_fallthru
      _
    %v35 = vld [vmem:[%s0] sm:$0xff]
    %v36 = vld [vmem:[%s0 + $0x8] sm:$0xff]
    %v37 = vld [vmem:[%s1] sm:$0xff]
    %v38 = vld [vmem:[%s1 + $0x8] sm:$0xff]
    %v39 = vld [vmem:[%s1 + $0x10] sm:$0xff]
    %v40 = vld [vmem:[%s1 + $0x18] sm:$0xff]
    %v41 = vld [vmem:[%s2] sm:$0x1]
    %v43 = vlaneseq
    %v44 = vshrl.u32 %v43, 7
    %v45 = vsub.s32 0, %v44
    %v46 = vrot.slane %v41, %v45
    %vm48 = vcmask 261120
    %v50 = vsel %vm48, %v35, 0
    %v53 = vsel %vm48, %v36, 0
    %55 = vmatprep.subr.mxu0 0.0
    %56 = vmatpush1.msra.mxu0 0.0
    %57 = vmatprep.subr.mxu0 0.0
    %58 = vmatpush1.msra.mxu0 0.0
    %59 = vmatprep.subr.mxu0 0.0
    %60 = vmatpush1.msra.mxu0 0.0
    %61 = vmatprep.subr.mxu0 0.0
    %62 = vmatpush1.msra.mxu0 0.0
    %63 = vmatprep.subr.mxu0 0.0
    %64 = vmatpush1.msra.mxu0 0.0
    %65 = vmatprep.subr.mxu0 0.0
    %66 = vmatpush1.msra.mxu0 0.0
    %67 = vmatprep.subr.mxu0 0.0
    %68 = vmatpush1.msra.mxu0 0.0
    %69 = vmatprep.subr.mxu0 0.0
    %70 = vmatpush1.msra.mxu0 0.0
    %71 = vmatprep.subr.mxu0 0.0
    %72 = vmatpush1.msra.mxu0 0.0
    %73 = vmatprep.subr.mxu0 0.0
    %74 = vmatpush1.msra.mxu0 0.0
    %75 = vmatprep.subr.mxu0 0.0
    %76 = vmatpush1.msra.mxu0 0.0
    %77 = vmatprep.subr.mxu0 0.0
    %78 = vmatpush1.msra.mxu0 0.0
    %79 = vmatprep.subr.mxu0 0.0
    %80 = vmatpush1.msra.mxu0 %v40
    %81 = vmatprep.subr.mxu0 0.0
    %82 = vmatpush1.msra.mxu0 %v39
    %83 = vmatprep.subr.mxu0 0.0
    %84 = vmatpush1.msra.mxu0 %v38
    %85 = vmatprep.subr.mxu0 0.0
    %86 = vmatpush1.msra.mxu0 %v37
    %87 = vmatprep.subr.mxu0 0.0
    %88 = vmatpush2.msra.mxu0 0.0
    %89 = vmatprep.subr.mxu0 0.0
    %90 = vmatpush2.msra.mxu0 0.0
    %91 = vmatprep.subr.mxu0 0.0
    %92 = vmatpush2.msra.mxu0 0.0
    %93 = vmatprep.subr.mxu0 0.0
    %94 = vmatpush2.msra.mxu0 0.0
    %95 = vmatprep.subr.mxu0 0.0
    %96 = vmatpush2.msra.mxu0 0.0
    %97 = vmatprep.subr.mxu0 0.0
    %98 = vmatpush2.msra.mxu0 0.0
    %99 = vmatprep.subr.mxu0 0.0
    %100 = vmatpush2.msra.mxu0 0.0
    %101 = vmatprep.subr.mxu0 0.0
    %102 = vmatpush2.msra.mxu0 0.0
    %103 = vmatprep.subr.mxu0 0.0
    %104 = vmatpush2.msra.mxu0 0.0
    %105 = vmatprep.subr.mxu0 0.0
    %106 = vmatpush2.msra.mxu0 0.0
    %107 = vmatprep.subr.mxu0 0.0
    %108 = vmatpush2.msra.mxu0 0.0
    %109 = vmatprep.subr.mxu0 0.0
    %110 = vmatpush2.msra.mxu0 0.0
    %111 = vmatprep.subr.mxu0 0.0
    %112 = vmatpush2.msra.mxu0 0.0
    %113 = vmatprep.subr.mxu0 0.0
    %114 = vmatpush2.msra.mxu0 0.0
    %115 = vmatprep.subr.mxu0 0.0
    %116 = vmatpush2.msra.mxu0 0.0
    %117 = vmatprep.subr.mxu0 0.0
    %118 = vmatpush2.msra.mxu0 0.0
    %119 = vmatprep.mubr.f32.mxu0 0.0
    %120 = vmatmul.mubr.f32.gmra.mxu0 %v50
    %v121 = vpop.f32.mrf.mxu0
    %v122 = vadd.f32 %v46, %v121
    %v123 = vpop.f32.mrf.mxu0
    %124 = vmatprep.mubr.f32.mxu0 0.0
    %125 = vmatmul.mubr.f32.gmra.mxu0 %v53
    %v126 = vpop.f32.mrf.mxu0
    %v127 = vadd.f32 %v46, %v126
    %v128 = vpop.f32.mrf.mxu0
    %129 = vdwg.mxu0
    %v130 = vmul.f32 %v122, 0.5
    %v131 = vmul.f32 %v127, 0.5
    %v132 = vmul.f32 %v122, 0.70710677
    %v133 = vmul.f32 %v127, 0.70710677
    %v134 = verf.f32.pop %v132
    %v135 = verf.f32.pop %v133
    %v136 = vadd.f32 %v134, 1.0
    %v137 = vadd.f32 %v135, 1.0
    %v138 = vmul.f32 %v130, %v136
    %v139 = vmul.f32 %v131, %v137
    %v140 = vld [vmem:[#allocation2] sm:$0xff]
    %v141 = vld [vmem:[#allocation2 + $0x8] sm:$0xff]
    %v142 = vld [vmem:[%s3] sm:$0xff]
    %v143 = vld [vmem:[%s3 + $0x8] sm:$0xff]
    %v144 = vld [vmem:[%s3 + $0x10] sm:$0xff]
    %v145 = vld [vmem:[%s3 + $0x18] sm:$0xff]
    %v146 = vld [vmem:[%s3 + $0x20] sm:$0xff]
    %v147 = vld [vmem:[%s3 + $0x28] sm:$0xff]
    %v148 = vld [vmem:[%s3 + $0x30] sm:$0xff]
    %v149 = vld [vmem:[%s3 + $0x38] sm:$0xff]
    %v150 = vld [vmem:[%s3 + $0x40] sm:$0xff]
    %v151 = vld [vmem:[%s3 + $0x48] sm:$0xff]
    %v152 = vld [vmem:[%s3 + $0x50] sm:$0xff]
    %v153 = vld [vmem:[%s3 + $0x58] sm:$0xff]
    %v154 = vld [vmem:[%s3 + $0x60] sm:$0xff]
    %v155 = vld [vmem:[%s3 + $0x68] sm:$0xff]
    %v156 = vld [vmem:[%s3 + $0x70] sm:$0xff]
    %v157 = vld [vmem:[%s3 + $0x78] sm:$0xff]
    %158 = vmatprep.subr.mxu0 0.0
    %159 = vmatpush1.msra.mxu0 %v157
    %160 = vmatprep.subr.mxu0 0.0
    %161 = vmatpush1.msra.mxu0 %v156
    %162 = vmatprep.subr.mxu0 0.0
    %163 = vmatpush1.msra.mxu0 %v155
    %164 = vmatprep.subr.mxu0 0.0
    %165 = vmatpush1.msra.mxu0 %v154
    %166 = vmatprep.subr.mxu0 0.0
    %167 = vmatpush1.msra.mxu0 %v153
    %168 = vmatprep.subr.mxu0 0.0
    %169 = vmatpush1.msra.mxu0 %v152
    %170 = vmatprep.subr.mxu0 0.0
    %171 = vmatpush1.msra.mxu0 %v151
    %172 = vmatprep.subr.mxu0 0.0
    %173 = vmatpush1.msra.mxu0 %v150
    %174 = vmatprep.subr.mxu0 0.0
    %175 = vmatpush1.msra.mxu0 %v149
    %176 = vmatprep.subr.mxu0 0.0
    %177 = vmatpush1.msra.mxu0 %v148
    %178 = vmatprep.subr.mxu0 0.0
    %179 = vmatpush1.msra.mxu0 %v147
    %180 = vmatprep.subr.mxu0 0.0
    %181 = vmatpush1.msra.mxu0 %v146
    %182 = vmatprep.subr.mxu0 0.0
    %183 = vmatpush1.msra.mxu0 %v145
    %184 = vmatprep.subr.mxu0 0.0
    %185 = vmatpush1.msra.mxu0 %v144
    %186 = vmatprep.subr.mxu0 0.0
    %187 = vmatpush1.msra.mxu0 %v143
    %188 = vmatprep.subr.mxu0 0.0
    %189 = vmatpush1.msra.mxu0 %v142
    %190 = vmatprep.subr.mxu0 0.0
    %191 = vmatpush2.msra.mxu0 0.0
    %192 = vmatprep.subr.mxu0 0.0
    %193 = vmatpush2.msra.mxu0 0.0
    %194 = vmatprep.subr.mxu0 0.0
    %195 = vmatpush2.msra.mxu0 0.0
    %196 = vmatprep.subr.mxu0 0.0
    %197 = vmatpush2.msra.mxu0 0.0
    %198 = vmatprep.subr.mxu0 0.0
    %199 = vmatpush2.msra.mxu0 0.0
    %200 = vmatprep.subr.mxu0 0.0
    %201 = vmatpush2.msra.mxu0 0.0
    %202 = vmatprep.subr.mxu0 0.0
    %203 = vmatpush2.msra.mxu0 0.0
    %204 = vmatprep.subr.mxu0 0.0
    %205 = vmatpush2.msra.mxu0 0.0
    %206 = vmatprep.subr.mxu0 0.0
    %207 = vmatpush2.msra.mxu0 0.0
    %208 = vmatprep.subr.mxu0 0.0
    %209 = vmatpush2.msra.mxu0 0.0
    %210 = vmatprep.subr.mxu0 0.0
    %211 = vmatpush2.msra.mxu0 0.0
    %212 = vmatprep.subr.mxu0 0.0
    %213 = vmatpush2.msra.mxu0 0.0
    %214 = vmatprep.subr.mxu0 0.0
    %215 = vmatpush2.msra.mxu0 0.0
    %216 = vmatprep.subr.mxu0 0.0
    %217 = vmatpush2.msra.mxu0 0.0
    %218 = vmatprep.subr.mxu0 0.0
    %219 = vmatpush2.msra.mxu0 0.0
    %220 = vmatprep.subr.mxu0 0.0
    %221 = vmatpush2.msra.mxu0 0.0
    %222 = vmatprep.mubr.f32.mxu0 0.0
    %223 = vmatmul.mubr.f32.gmra.mxu0 %v138
    %v224 = vpop.f32.mrf.mxu0
    %v225 = vadd.f32 0.0, %v224
    %v226 = vpop.f32.mrf.mxu0
    %227 = vmatprep.mubr.f32.mxu0 0.0
    %228 = vmatmul.mubr.f32.gmra.mxu0 %v139
    %v229 = vpop.f32.mrf.mxu0
    %v230 = vadd.f32 0.0, %v229
    %v231 = vpop.f32.mrf.mxu0
    %232 = vdwg.mxu0
    %v233 = vadd.f32 %v140, %v225
    %v234 = vadd.f32 %v141, %v230
    %235 = vst.msk [vmem:[#allocation2] sm:$0xff] %vm48, %v233
    %236 = vst.msk [vmem:[#allocation2 + $0x8] sm:$0xff] %vm48, %v234
    // Predicated region
    $region26: #{tpu_custom_call.1} parent=1 // pred_check
      %p237 = pneg %p21
    $region27: #{tpu_custom_call.1} parent=1 // pred_check_branch
      %239 = sbr.rel (%p237) target = $region29
    $region28: #{tpu_custom_call.1} parent=1 // pred_region
      %v240 = vld [vmem:[#allocation2] sm:$0xff]
      %v241 = vld [vmem:[#allocation2 + $0x8] sm:$0xff]
      %242 = vst.msk [vmem:[#allocation3] sm:$0xff] %vm48, %v240
      %243 = vst.msk [vmem:[#allocation3 + $0x8] sm:$0xff] %vm48, %v241
    $region29: #{tpu_custom_call.1} parent=1 // pred_fallthru
      _
    // Predicated region
    $region30: #{tpu_custom_call.1} parent=1 // pred_check
      _
    $region31: #{tpu_custom_call.1} parent=1 // pred_check_branch
      %245 = sbr.rel (0) target = $region33
    $region32: #{tpu_custom_call.1} parent=1 // pred_region
      %s247 = ssub.s32 256, 256
      %248 = vsyncadd [#allocation4], %s247
      %s249 = sshll.u32 [#allocation3], 4
      %s250 = int_to_ptr.vmem [resolvable:$true] %s249
      %255 = dma.vmem_to_hbm [thread:$0]  %s250, 256, %s5, [#allocation4], 128, 128, 8
    $region33: #{tpu_custom_call.1} parent=1 // pred_fallthru
      _
    // Predicated region
    $region34: #{tpu_custom_call.1} parent=1 // pred_check
      _
    $region35: #{tpu_custom_call.1} parent=1 // pred_check_branch
      %257 = sbr.rel (0) target = $region37
    $region36: #{tpu_custom_call.1} parent=1 // pred_region
      %258 = dma.done [#allocation4], 256
    $region37: #{tpu_custom_call.1} parent=1 // pred_fallthru
      _
    %259 = vsyncpa [#allocation4], 1

</llo_original>
